<compile_context>
chip_gen: v5e
topology: v5e:2x2
jax: 0.10.0
libtpu: 0.0.40
codegen_flags: <defaults>
</compile_context>

<pallas_src>
import functools

import jax
import jax.numpy as jnp
from jax.experimental import pallas as pl
from jax.experimental.pallas import tpu as pltpu


def _round_up(x, m):
    return (x + m - 1) // m * m


def _bce_kernel(score_ref, label_ref, weight_ref, out_ref, *,
                n_rows, block_rows, ragged):
    x = score_ref[...].astype(jnp.float32)        # (bm, C) logits
    lbl = label_ref[...]                          # (bm, 1) int32 gt classes
    w = weight_ref[...].astype(jnp.float32)       # (bm, 1) per-sample weights

    bm, c = x.shape

    # Fused one-hot: x * one_hot(lbl) == where(cls_idx == lbl, x, 0).
    cls_idx = jax.lax.broadcasted_iota(jnp.int32, (bm, c), 1)
    xt = jnp.where(cls_idx == lbl, x, 0.0)

    # Numerically stable binary_cross_entropy_with_logits (reduction='none'):
    #   max(x, 0) - x*target + log1p(exp(-|x|))
    loss = jnp.maximum(x, 0.0) - xt + jnp.log1p(jnp.exp(-jnp.abs(x)))

    # weight_reduce_loss: per-sample weight broadcast over classes.
    loss = loss * w

    if ragged:
        # Ragged last row block: rows >= n_rows hold unspecified data
        # (possibly Inf/NaN logits and garbage weights), so select them to
        # zero instead of relying on a zero multiply (Inf * 0 = NaN).
        row_idx = (jax.lax.broadcasted_iota(jnp.int32, (bm, c), 0)
                   + pl.program_id(0) * block_rows)
        loss = jnp.where(row_idx < n_rows, loss, 0.0)

    # Per-step partial: column sums only (sublane/VPU reduce, lane-dense
    # (1, C) store into this step's own output slot -> grid axis is parallel).
    out_ref[...] = jnp.sum(loss, axis=0, keepdims=True).reshape(1, 1, c)


@functools.partial(jax.jit,
                   static_argnames=("reduction", "loss_weight", "max_block_rows"))
def bce_loss(cls_score, label, label_weight, *, avg_factor=None,
             reduction="mean", loss_weight=1.0, max_block_rows=4096):
    """Pallas BCE loss.

    cls_score:    (N, C) float (f32 or bf16)
    label:        (N,)   int   (gt class index per row)
    label_weight: (N,)   float
    """
    n, c = cls_score.shape

    # Row tile sized by bytes: target ~2 MiB per f32 temporary tile (lane
    # width rounds up to a 128 multiple inside vregs).  Clamped to
    # [16, max_block_rows] and to the row count, and kept a multiple of 16 so
    # bf16 inputs respect the (16, 128) min tile.  With ~5-6 live f32 temps
    # plus the double-buffered input this stays inside the 48 MiB VMEM limit
    # requested below (safe on v5e/v6e 128 MiB and v7x 64 MiB).
    lane_c = _round_up(c, 128)
    bm = (2 * 1024 * 1024) // (lane_c * 4)
    bm = max(16, min(bm, max_block_rows, _round_up(n, 16)))
    bm = max(16, (bm // 16) * 16)

    num_steps = pl.cdiv(n, bm)
    ragged = (n % bm) != 0

    label2d = label.astype(jnp.int32).reshape(n, 1)
    weight2d = label_weight.astype(jnp.float32).reshape(n, 1)

    partials = pl.pallas_call(
        functools.partial(_bce_kernel, n_rows=n, block_rows=bm, ragged=ragged),
        out_shape=jax.ShapeDtypeStruct((num_steps, 1, c), jnp.float32),
        grid_spec=pltpu.PrefetchScalarGridSpec(
            num_scalar_prefetch=0,
            grid=(num_steps,),
            in_specs=[
                pl.BlockSpec((bm, c), lambda i: (i, 0)),
                pl.BlockSpec((bm, 1), lambda i: (i, 0)),
                pl.BlockSpec((bm, 1), lambda i: (i, 0)),
            ],
            out_specs=pl.BlockSpec((1, 1, c), lambda i: (i, 0, 0)),
        ),
        compiler_params=pltpu.CompilerParams(
            # Independent per-step partials -> parallel grid axis.
            dimension_semantics=("parallel",),
            vmem_limit_bytes=48 * 1024 * 1024,
        ),
    )(cls_score, label2d, weight2d)

    weighted_sum = jnp.sum(partials)

    if reduction == "mean":
        if avg_factor is None:
            red = weighted_sum / jnp.float32(n * c)
        else:
            red = weighted_sum / jnp.asarray(avg_factor, jnp.float32)
    elif reduction == "sum":
        red = weighted_sum
    else:
        # TODO(synk): reduction='none' would return the (N, C) weighted loss
        # map; not wired through this scalar-reducing kernel.
        raise NotImplementedError("reduction='none' not wired through this kernel")

    return jnp.float32(loss_weight) * red


def _reference(cls_score, label, label_weight, loss_weight=1.0):
    n, c = cls_score.shape
    target = jax.nn.one_hot(label, c, dtype=jnp.float32)
    x = cls_score.astype(jnp.float32)
    loss = jnp.maximum(x, 0.0) - x * target + jnp.log1p(jnp.exp(-jnp.abs(x)))
    loss = loss * label_weight.astype(jnp.float32)[:, None]
    return loss_weight * jnp.mean(loss)


if __name__ == "__main__":
    key = jax.random.PRNGKey(0)
    k1, k2, k3, k4, k5, k6 = jax.random.split(key, 6)

    # Case 1: single block, non-128-multiple class width, ragged rows (N < 16).
    N, C = 12, 21
    cls_score = jax.random.normal(k1, (N, C), dtype=jnp.float32)
    label = jax.random.randint(k2, (N,), 0, C, dtype=jnp.int32)
    label_weight = jax.random.uniform(k3, (N,), dtype=jnp.float32)

    out = jax.block_until_ready(bce_loss(cls_score, label, label_weight))
    ref = _reference(cls_score, label, label_weight)
    assert jnp.allclose(out, ref, rtol=1e-5, atol=1e-5), (out, ref)

    # Case 2: multi-step grid with a ragged last block (forced small tile).
    N2, C2 = 50, 33
    cls_score2 = jax.random.normal(k4, (N2, C2), dtype=jnp.float32)
    label2 = jax.random.randint(k5, (N2,), 0, C2, dtype=jnp.int32)
    label_weight2 = jax.random.uniform(k6, (N2,), dtype=jnp.float32)

    out2 = jax.block_until_ready(
        bce_loss(cls_score2, label2, label_weight2, max_block_rows=16))
    ref2 = _reference(cls_score2, label2, label_weight2)
    assert jnp.allclose(out2, ref2, rtol=1e-5, atol=1e-5), (out2, ref2)

    print("KERNEL_OK")
</pallas_src>

<mosaic_0001>
module attributes {stable_mosaic.version = 11 : i64} {
  func.func @_bce_kernel(%arg0: i32, %arg1: memref<16x21xf32, #tpu.memory_space<vmem>>, %arg2: memref<16x1xi32, #tpu.memory_space<vmem>>, %arg3: memref<16x1xf32, #tpu.memory_space<vmem>>, %arg4: memref<1x1x21xf32, #tpu.memory_space<vmem>>) attributes {dimension_semantics = [#tpu.dimension_semantics<parallel>], iteration_bounds = array<i64: 1>, scalar_prefetch = 0 : i64, scratch_operands = 0 : i64, tpu.core_type = #tpu.core_type<tc>, window_params = [{transform_indices = @transform_0, window_bounds = array<i64: 16, 21>}, {transform_indices = @transform_1, window_bounds = array<i64: 16, 1>}, {transform_indices = @transform_2, window_bounds = array<i64: 16, 1>}, {transform_indices = @transform_3, window_bounds = array<i64: 1, 1, 21>}]} {
    %c0 = arith.constant 0 : index
    %c0_0 = arith.constant 0 : index
    %0 = vector.load %arg1[%c0, %c0_0] : memref<16x21xf32, #tpu.memory_space<vmem>>, vector<16x21xf32>
    %c0_1 = arith.constant 0 : index
    %c0_2 = arith.constant 0 : index
    %1 = vector.load %arg2[%c0_1, %c0_2] : memref<16x1xi32, #tpu.memory_space<vmem>>, vector<16x1xi32>
    %c0_3 = arith.constant 0 : index
    %c0_4 = arith.constant 0 : index
    %2 = vector.load %arg3[%c0_3, %c0_4] : memref<16x1xf32, #tpu.memory_space<vmem>>, vector<16x1xf32>
    %3 = tpu.iota {dimensions = array<i32: 1>} : vector<16x21xi32>
    %4 = vector.broadcast %1 : vector<16x1xi32> to vector<16x21xi32>
    %5 = arith.cmpi eq, %3, %4 : vector<16x21xi32>
    %cst = arith.constant 0.000000e+00 : f32
    %6 = vector.broadcast %cst : f32 to vector<16x21xf32>
    %7 = arith.select %5, %0, %6 : vector<16x21xi1>, vector<16x21xf32>
    %cst_5 = arith.constant 0.000000e+00 : f32
    %8 = vector.broadcast %cst_5 : f32 to vector<16x21xf32>
    %9 = arith.maximumf %0, %8 : vector<16x21xf32>
    %10 = arith.subf %9, %7 : vector<16x21xf32>
    %11 = math.absf %0 : vector<16x21xf32>
    %cst_6 = arith.constant 0.000000e+00 : f32
    %12 = vector.broadcast %cst_6 : f32 to vector<16x21xf32>
    %13 = arith.subf %12, %11 : vector<16x21xf32>
    %14 = math.exp %13 : vector<16x21xf32>
    %15 = math.log1p %14 : vector<16x21xf32>
    %16 = arith.addf %10, %15 : vector<16x21xf32>
    %17 = vector.broadcast %2 : vector<16x1xf32> to vector<16x21xf32>
    %18 = arith.mulf %16, %17 : vector<16x21xf32>
    %19 = tpu.iota {dimensions = array<i32: 0>} : vector<16x21xi32>
    %c16_i32 = arith.constant 16 : i32
    %20 = arith.muli %arg0, %c16_i32 : i32
    %21 = vector.broadcast %20 : i32 to vector<16x21xi32>
    %22 = arith.addi %19, %21 : vector<16x21xi32>
    %c12_i32 = arith.constant 12 : i32
    %23 = vector.broadcast %c12_i32 : i32 to vector<16x21xi32>
    %24 = arith.cmpi slt, %22, %23 : vector<16x21xi32>
    %cst_7 = arith.constant 0.000000e+00 : f32
    %25 = vector.broadcast %cst_7 : f32 to vector<16x21xf32>
    %26 = arith.select %24, %18, %25 : vector<16x21xi1>, vector<16x21xf32>
    %cst_8 = arith.constant dense<0.000000e+00> : vector<21xf32>
    %27 = vector.multi_reduction <add>, %26, %cst_8 [0] : vector<16x21xf32> to vector<21xf32>
    %28 = vector.shape_cast %27 : vector<21xf32> to vector<1x21xf32>
    %29 = vector.shape_cast %28 : vector<1x21xf32> to vector<1x1x21xf32>
    %c0_9 = arith.constant 0 : index
    %c0_10 = arith.constant 0 : index
    %c0_11 = arith.constant 0 : index
    %30 = vector.load %arg4[%c0_9, %c0_10, %c0_11] : memref<1x1x21xf32, #tpu.memory_space<vmem>>, vector<1x1x21xf32>
    tpu.vector_store %arg4[%c0_9, %c0_10, %c0_11], %29 {strides = array<i32>} : memref<1x1x21xf32, #tpu.memory_space<vmem>>, vector<1x1x21xf32>,
    return
  }
  func.func @transform_0(%arg0: i32) -> (i32, i32) {
    %c0_i32 = arith.constant 0 : i32
    %c0_i32_0 = arith.constant 0 : i32
    return %arg0, %c0_i32 : i32, i32
  }
  func.func @transform_1(%arg0: i32) -> (i32, i32) {
    %c0_i32 = arith.constant 0 : i32
    %c0_i32_0 = arith.constant 0 : i32
    return %arg0, %c0_i32 : i32, i32
  }
  func.func @transform_2(%arg0: i32) -> (i32, i32) {
    %c0_i32 = arith.constant 0 : i32
    %c0_i32_0 = arith.constant 0 : i32
    return %arg0, %c0_i32 : i32, i32
  }
  func.func @transform_3(%arg0: i32) -> (i32, i32, i32) {
    %c0_i32 = arith.constant 0 : i32
    %c0_i32_0 = arith.constant 0 : i32
    %c0_i32_1 = arith.constant 0 : i32
    return %arg0, %c0_i32, %c0_i32_0 : i32, i32, i32
  }
}

</mosaic_0001>

<llo_original>
// kernel: bce_loss.1
$region0: #{bce_loss.1}
  #allocation0 [shape = 'u32[]', space=smem, size = 0x4, offset = 0x4, fixed_abs, tag = 'smem constant byte address 0x4 - core index']
  #allocation1 [shape = 'u32[72,128]{1,0:T(1,128)}', space=vmem, size = 0x9000, scoped, tag = 'internal scratch']
  %s0 = inlined_call_operand.vmem [shape: f32[12,21], index: 0, kind: input, shape index: {}]
  %s1 = inlined_call_operand.vmem [shape: s32[12,1], index: 1, kind: input, shape index: {}]
  %s2 = inlined_call_operand.vmem [shape: f32[12,1], index: 2, kind: input, shape index: {}]
  %s3 = inlined_call_operand.vmem [shape: f32[1,1,21], index: 3, kind: output, shape index: {}]
  %s4 = sld [smem:[#allocation0]]
  $region22: #{bce_loss.1} parent=0
    _
  %s6 = ssub.s32 1, %s4
  %s7 = scalar_select 0, %s6, %s4
  // Predicated region
  $region2: #{bce_loss.1} parent=0 // pred_check
    _
  $region3: #{bce_loss.1} parent=0 // pred_check_branch
    %9 = sbr.rel (0) target = $region5
  $region4: #{bce_loss.1} parent=0 // pred_region
    _
  $region5: #{bce_loss.1} parent=0 // pred_fallthru
    _
  // Predicated region
  $region6: #{bce_loss.1} parent=0 // pred_check
    _
  $region7: #{bce_loss.1} parent=0 // pred_check_branch
    %11 = sbr.rel (0) target = $region9
  $region8: #{bce_loss.1} parent=0 // pred_region
    _
  $region9: #{bce_loss.1} parent=0 // pred_fallthru
    _
  // Predicated region
  $region10: #{bce_loss.1} parent=0 // pred_check
    _
  $region11: #{bce_loss.1} parent=0 // pred_check_branch
    %13 = sbr.rel (0) target = $region13
  $region12: #{bce_loss.1} parent=0 // pred_region
    _
  $region13: #{bce_loss.1} parent=0 // pred_fallthru
    _
  %v14 = vld [vmem:[%s0] sm:$0xff]
  %v15 = vld [vmem:[%s0 + $0x8] sm:$0xff]
  %v16 = vld [vmem:[%s1] sm:$0xff]
  %v17 = vld [vmem:[%s1 + $0x8] sm:$0xff]
  %v18 = vld [vmem:[%s2] sm:$0xff]
  %v19 = vld [vmem:[%s2 + $0x8] sm:$0xff]
  %v20 = vlaneseq
  %v21 = vand.u32 %v20, 127
  %22 = vset.pattern.permute.xlu0 0
  %23 = vperm.xlu0 %22, %v16
  %v24 = vpop.permute.xlu0 %23
  %25 = vset.pattern.permute.xlu0 0
  %26 = vperm.xlu0 %25, %v17
  %v27 = vpop.permute.xlu0 %26
  %vm28 = vcmp.eq.s32.totalorder %v21, %v24
  %vm29 = vcmp.eq.s32.totalorder %v21, %v27
  %v30 = vsel %vm28, %v14, 0.0
  %v31 = vsel %vm29, %v15, 0.0
  %v32 = vmax.f32 %v14, 0.0
  %v33 = vmax.f32 %v15, 0.0
  %v34 = vsub.f32 %v32, %v30
  %v35 = vsub.f32 %v33, %v31
  %v36 = vand.u32 2147483647, %v14
  %v37 = vand.u32 2147483647, %v15
  %v38 = vsub.f32 0.0, %v36
  %v39 = vsub.f32 0.0, %v37
  %v40 = vmul.f32 %v38, 1.442695
  %v41 = vpow.pop %v40
  %v42 = vmul.f32 %v39, 1.442695
  %v43 = vpow.pop %v42
  %v44 = vadd.f32 %v41, 1.0
  %v45 = vlog2.pop %v44
  %v46 = vmul.f32 %v45, 0.6931472
  %v47 = vmul.f32 -0.5, %v41
  %v48 = vadd.f32 %v47, 1.0
  %v49 = vmul.f32 %v48, %v41
  %v50 = vand.u32 2147483647, %v41
  %vm51 = vcmp.lt.f32.partialorder %v50, 0.0004427343
  %v52 = vsel %vm51, %v49, %v46
  %v53 = vadd.f32 %v43, 1.0
  %v54 = vlog2.pop %v53
  %v55 = vmul.f32 %v54, 0.6931472
  %v56 = vmul.f32 -0.5, %v43
  %v57 = vadd.f32 %v56, 1.0
  %v58 = vmul.f32 %v57, %v43
  %v59 = vand.u32 2147483647, %v43
  %vm60 = vcmp.lt.f32.partialorder %v59, 0.0004427343
  %v61 = vsel %vm60, %v58, %v55
  %v62 = vadd.f32 %v34, %v52
  %v63 = vadd.f32 %v35, %v61
  %65 = vset.pattern.permute.xlu0 0
  %66 = vperm.xlu0 %65, %v18
  %v67 = vpop.permute.xlu0 %66
  %70 = vset.pattern.permute.xlu0 0
  %71 = vperm.xlu0 %70, %v19
  %v72 = vpop.permute.xlu0 %71
  %v74 = vmul.f32 %v62, %v67
  %v75 = vmul.f32 %v63, %v72
  %v76 = vlaneseq
  %v77 = vshrl.u32 %v76, 7
  %v78 = vadd.s32 %v77, 8
  %s79 = smul.u32 0, 16
  %v80 = vstv %s79
  %v81 = vadd.s32 %v77, %v80
  %v82 = vadd.s32 %v78, %v80
  %vm83 = vcmp.lt.s32.totalorder %v81, 12
  %vm84 = vcmp.lt.s32.totalorder %v82, 12
  %v85 = vsel %vm83, %v74, 0.0
  %v86 = vsel %vm84, %v75, 0.0
  %vm87 = vcmask 171008
  %v88 = vsel %vm87, %v85, 0.0
  %v89 = vsel %vm87, %v86, 0.0
  %v90 = vadd.f32 %v88, %v89
  %v91 = vrot.slane %v90, 4
  %v92 = vadd.f32 %v90, %v91
  %v93 = vrot.slane %v92, 2
  %v94 = vadd.f32 %v92, %v93
  %v95 = vrot.slane %v94, 1
  %v96 = vadd.f32 %v94, %v95
  %vm97 = vcmask 163840
  %98 = vst.msk [vmem:[%s3] sm:$0x1] %vm97, %v96
  // Predicated region
  $region14: #{bce_loss.1} parent=0 // pred_check
    _
  $region15: #{bce_loss.1} parent=0 // pred_check_branch
    %100 = sbr.rel (0) target = $region17
  $region16: #{bce_loss.1} parent=0 // pred_region
    _
  $region17: #{bce_loss.1} parent=0 // pred_fallthru
    _
  // Predicated region
  $region18: #{bce_loss.1} parent=0 // pred_check
    _
  $region19: #{bce_loss.1} parent=0 // pred_check_branch
    %102 = sbr.rel (0) target = $region21
  $region20: #{bce_loss.1} parent=0 // pred_region
    _
  $region21: #{bce_loss.1} parent=0 // pred_fallthru
    _

</llo_original>
